<compile_context>
chip_gen: v7x
topology: tpu7x:2x2x1
jax: 0.10.0
libtpu: 0.0.40
codegen_flags: <defaults>
</compile_context>

<pallas_src>
import functools

import jax
import jax.numpy as jnp
from jax.experimental import pallas as pl
from jax.experimental.pallas import tpu as pltpu


def _fused_conv_kernel(*refs, norm, relu, has_residual):
    """One grid step = one (batch, O-tile): conv matmul + norm + res + ReLU.

    Refs (in order):
      feat_ref: (1, K, E)  bf16 stacked GeMM features (K = 5C, +1 if bias folded)
      w_ref:    (TO, K)    bf16 fused conv weight (bias column appended if folded)
      r_ref:    (1, TO, E) residual           (only when has_residual)
      o_ref:    (1, TO, E) output
    """
    refs = list(refs)
    feat_ref = refs.pop(0)
    w_ref = refs.pop(0)
    r_ref = refs.pop(0) if has_residual else None
    o_ref = refs.pop(0)
    assert not refs

    # Single MXU matmul: (TO, K) @ (K, E) -> (TO, E), f32 accumulation.
    y = jnp.dot(w_ref[...], feat_ref[0], preferred_element_type=jnp.float32)

    if norm:
        # nn.InstanceNorm2d(affine=False, track_running_stats=False):
        # per-(sample, channel) stats over the E edges, biased variance,
        # eps = 1e-5.  Two-pass (centred) variance; the conv bias is cancelled
        # by the mean subtraction so it was never added.
        inv_e = 1.0 / y.shape[-1]
        m = jnp.sum(y, axis=-1, keepdims=True) * inv_e
        yc = y - m
        var = jnp.sum(yc * yc, axis=-1, keepdims=True) * inv_e
        y = yc * jax.lax.rsqrt(var + 1e-5)

    if r_ref is not None:
        y = y + r_ref[0].astype(jnp.float32)
    if relu:
        y = jnp.maximum(y, 0.0)
    o_ref[0] = y.astype(o_ref.dtype)


def _pick_o_tile(o, max_tile=256):
    """Largest O-tile <= max_tile that is a multiple of 8 and divides O (or O)."""
    if o <= max_tile:
        return o
    t = (max_tile // 8) * 8
    while t >= 8:
        if o % t == 0:
            return t
        t -= 8
    return o


def _gemm_features(x, nbrs):
    """Stacked symmetric GeMM features, (B, 5C, E) bf16.

    x: (B, C, E); nbrs: (B, 4, E) int32 gemm neighbour ids, -1 = boundary pad
    (pad -> zero neighbour feature, reproducing MeshCNN's pad_gemm).
    """
    B, C, E = x.shape
    safe = jnp.clip(nbrs, 0, E - 1)
    idx = jnp.broadcast_to(safe[:, :, None, :], (B, 4, C, E))
    src = jnp.broadcast_to(x[:, None, :, :], (B, 4, C, E))
    g = jnp.take_along_axis(src, idx, axis=3)                    # (B, 4, C, E)
    g = jnp.where((nbrs < 0)[:, :, None, :], 0, g)
    f1, f2, f3, f4 = g[:, 0], g[:, 1], g[:, 2], g[:, 3]
    feats = jnp.concatenate(
        [x, f1 + f3, f2 + f4, jnp.abs(f1 - f3), jnp.abs(f2 - f4)], axis=1)
    return feats.astype(jnp.bfloat16)


def mesh_conv_pallas(x, nbrs, w, b, residual=None, *, norm=False, relu=False,
                     out_dtype=jnp.float32):
    """MeshConv (1x5 conv over GeMM features) [+ InstanceNorm][+ residual][+ ReLU].

    x: (B, C, E), nbrs: (B, 4, E) int32, w: (O, C, 5) torch layout, b: (O,),
    residual: optional (B, O, E).  Returns (B, O, E) in `out_dtype`.
    """
    B, C, E = x.shape
    O = w.shape[0]

    feats = _gemm_features(x, nbrs)                              # (B, 5C, E) bf16
    # w_fused[o, k*C + c] = w[o, c, k]  matches the feature-channel ordering.
    w_fused = jnp.transpose(w, (0, 2, 1)).reshape(O, 5 * C)
    if not norm:
        # Fold the bias into the matmul via an extra ones-feature row.
        feats = jnp.concatenate([feats, jnp.ones((B, 1, E), feats.dtype)],
                                axis=1)
        w_fused = jnp.concatenate([w_fused, b[:, None]], axis=1)
    w_fused = w_fused.astype(jnp.bfloat16)
    K = w_fused.shape[1]

    TO = _pick_o_tile(O)
    grid = (B, O // TO)

    in_specs = [
        pl.BlockSpec((1, K, E), lambda bi, oi: (bi, 0, 0)),
        pl.BlockSpec((TO, K), lambda bi, oi: (oi, 0)),
    ]
    args = [feats, w_fused]
    if residual is not None:
        in_specs.append(pl.BlockSpec((1, TO, E), lambda bi, oi: (bi, oi, 0)))
        args.append(residual)

    kernel = functools.partial(_fused_conv_kernel, norm=norm, relu=relu,
                               has_residual=residual is not None)

    # Explicit VMEM budget: double-buffered blocks + a few (TO, E) f32 temps.
    out_bytes = TO * E * jnp.dtype(out_dtype).itemsize
    res_bytes = TO * E * residual.dtype.itemsize if residual is not None else 0
    blk_bytes = K * E * 2 + TO * K * 2 + out_bytes + res_bytes
    vmem_limit = int(min(max(3 * blk_bytes + 8 * TO * E * 4 + (1 << 20),
                             16 << 20), 64 << 20))

    cost = pl.CostEstimate(
        flops=2 * B * O * K * E,
        transcendentals=B * O if norm else 0,
        bytes_accessed=(feats.size * 2 + w_fused.size * 2
                        + (residual.size * residual.dtype.itemsize
                           if residual is not None else 0)
                        + B * O * E * jnp.dtype(out_dtype).itemsize),
    )

    return pl.pallas_call(
        kernel,
        out_shape=jax.ShapeDtypeStruct((B, O, E), out_dtype),
        grid=grid,
        in_specs=in_specs,
        out_specs=pl.BlockSpec((1, TO, E), lambda bi, oi: (bi, oi, 0)),
        compiler_params=pltpu.CompilerParams(
            dimension_semantics=("parallel", "parallel"),
            vmem_limit_bytes=vmem_limit),
        cost_estimate=cost,
    )(*args)


def init_upconv_params(key, in_channels, out_channels, blocks, transfer_data=True):
    """Deterministic synthetic parameters (MeshConv == Conv2d(cin, cout, (1, 5)))."""
    ks = jax.random.split(key, 2 * (blocks + 2))

    def conv_params(kw, kb, cin, cout):
        w = 0.1 * jax.random.normal(kw, (cout, cin, 5), jnp.float32)  # torch layout
        b = 0.1 * jax.random.normal(kb, (cout,), jnp.float32)
        return w, b

    params = {"up_conv": conv_params(ks[0], ks[1], in_channels, out_channels)}
    c1_in = 2 * out_channels if transfer_data else out_channels
    params["conv1"] = conv_params(ks[2], ks[3], c1_in, out_channels)
    params["conv2"] = [
        conv_params(ks[4 + 2 * i], ks[5 + 2 * i], out_channels, out_channels)
        for i in range(blocks)
    ]
    return params


def upconv_forward(params, from_up, from_down, nbrs, *,
                   transfer_data=True, residual=True, batch_norm=True):
    """from_up: (B, Cin, E), from_down: (B, Cout, E), nbrs: (B, E, 4) int32.

    Returns (B, Cout, E) f32, matching `x2.squeeze(3)` of the PyTorch module.
    """
    nbrs_t = jnp.transpose(nbrs, (0, 2, 1)).astype(jnp.int32)    # (B, 4, E), once
    n_blocks = len(params["conv2"])

    # x1 = self.up_conv(from_up, meshes).squeeze(3)     (no norm / relu here)
    w, b = params["up_conv"]
    x1 = mesh_conv_pallas(from_up, nbrs_t, w, b, out_dtype=jnp.bfloat16)

    # TODO(synk): MeshUnpool (unroll > 0) is mesh-topology dependent; module default unroll=0.

    # if transfer_data: x1 = torch.cat((x1, from_down), 1)
    if transfer_data:
        x1 = jnp.concatenate([x1, from_down.astype(x1.dtype)], axis=1)

    # x1 = relu(bn[0](conv1(x1)))
    w, b = params["conv1"]
    x1 = mesh_conv_pallas(x1, nbrs_t, w, b, norm=batch_norm, relu=True,
                          out_dtype=jnp.bfloat16 if n_blocks else jnp.float32)

    # residual blocks: x2 = relu(bn[i+1](conv2[i](x1)) + x1); x1 = x2
    x2 = x1
    for i, (w, b) in enumerate(params["conv2"]):
        last = (i == n_blocks - 1)
        x2 = mesh_conv_pallas(x1, nbrs_t, w, b,
                              residual=x1 if residual else None,
                              norm=batch_norm, relu=True,
                              out_dtype=jnp.float32 if last else jnp.bfloat16)
        x1 = x2
    return x2


def _reference_upconv(params, from_up, from_down, nbrs, *,
                      transfer_data=True, residual=True, batch_norm=True):
    """Pure-JAX f32 reference, faithful to the PyTorch module (bias always added)."""
    def gather(x, idx):                      # x (B,C,E), idx (B,E) with -1 = pad
        B, C, E = x.shape
        xp = jnp.concatenate([x, jnp.zeros((B, C, 1), x.dtype)], axis=2)
        safe = jnp.where(idx < 0, E, idx)
        return jax.vmap(lambda xb, ib: xb[:, ib])(xp, safe)

    def mesh_conv(x, w, b):
        w5 = jnp.transpose(w, (2, 0, 1))                         # (5, O, C)
        f1, f2, f3, f4 = (gather(x, nbrs[:, :, k]) for k in range(4))
        feats = [x, f1 + f3, f2 + f4, jnp.abs(f1 - f3), jnp.abs(f2 - f4)]
        y = sum(jnp.einsum("oc,bce->boe", w5[k], feats[k]) for k in range(5))
        return y + b[None, :, None]

    def inorm(y):
        m = jnp.mean(y, axis=2, keepdims=True)
        v = jnp.mean((y - m) ** 2, axis=2, keepdims=True)
        return (y - m) / jnp.sqrt(v + 1e-5)

    w, b = params["up_conv"]
    x1 = mesh_conv(from_up, w, b)
    if transfer_data:
        x1 = jnp.concatenate([x1, from_down], axis=1)
    w, b = params["conv1"]
    x1 = mesh_conv(x1, w, b)
    if batch_norm:
        x1 = inorm(x1)
    x1 = jax.nn.relu(x1)
    x2 = x1
    for (w, b) in params["conv2"]:
        x2 = mesh_conv(x1, w, b)
        if batch_norm:
            x2 = inorm(x2)
        if residual:
            x2 = x2 + x1
        x2 = jax.nn.relu(x2)
        x1 = x2
    return x2


if __name__ == "__main__":
    B, E = 2, 128                 # batch of meshes, edges per mesh
    in_channels, out_channels = 4, 8
    blocks = 1                    # UpConv(blocks=1, unroll=0, residual=True,
                                  #        batch_norm=True, transfer_data=True)

    key = jax.random.PRNGKey(0)
    k_up, k_down, k_nbr, k_param = jax.random.split(key, 4)

    from_up = jax.random.normal(k_up, (B, in_channels, E), jnp.float32)
    from_down = jax.random.normal(k_down, (B, out_channels, E), jnp.float32)
    # synthetic gemm_edges: 4 neighbour edge ids per edge, -1 = boundary padding
    nbrs = jax.random.randint(k_nbr, (B, E, 4), -1, E, dtype=jnp.int32)

    params = init_upconv_params(k_param, in_channels, out_channels, blocks,
                                transfer_data=True)

    fwd = jax.jit(functools.partial(upconv_forward, transfer_data=True,
                                    residual=True, batch_norm=True))
    out = jax.block_until_ready(fwd(params, from_up, from_down, nbrs))
    assert out.shape == (B, out_channels, E), out.shape
    assert out.dtype == jnp.float32
    assert bool(jnp.all(jnp.isfinite(out)))

    ref = _reference_upconv(params, from_up, from_down, nbrs,
                            transfer_data=True, residual=True, batch_norm=True)
    max_diff = float(jnp.max(jnp.abs(out - ref)))
    assert max_diff < 0.2, f"max|pallas-ref| = {max_diff}"
    print("KERNEL_OK")
</pallas_src>

<mosaic_0001>
module attributes {stable_mosaic.version = 11 : i64} {
  func.func private @main(%arg0: i32) attributes {dimension_semantics = [#tpu.dimension_semantics<core_parallel>], iteration_bounds = array<i64: 2>, tpu.core_type = #tpu.core_type<sc_scalar_subcore>, window_params = []} {
    return
  }
}

module attributes {stable_mosaic.version = 11 : i64} {
  func.func private @main(%arg0: i32) attributes {dimension_semantics = [#tpu.dimension_semantics<core_parallel>], iteration_bounds = array<i64: 2>, tpu.core_type = #tpu.core_type<sc_scalar_subcore>, window_params = []} {
    return
  }
}

module attributes {stable_mosaic.version = 11 : i64} {
  func.func @_fused_conv_kernel(%arg0: i32, %arg1: i32, %arg2: memref<1x21x128xbf16, #tpu.memory_space<vmem>>, %arg3: memref<8x21xbf16, #tpu.memory_space<vmem>>, %arg4: memref<1x8x128xbf16, #tpu.memory_space<vmem>>) attributes {dimension_semantics = [#tpu.dimension_semantics<parallel>, #tpu.dimension_semantics<parallel>], iteration_bounds = array<i64: 2, 1>, scalar_prefetch = 0 : i64, scratch_operands = 0 : i64, tpu.core_type = #tpu.core_type<tc>, window_params = [{transform_indices = @transform_0, window_bounds = array<i64: 1, 21, 128>}, {transform_indices = @transform_1, window_bounds = array<i64: 8, 21>}, {transform_indices = @transform_2, window_bounds = array<i64: 1, 8, 128>}]} {
    %c0 = arith.constant 0 : index
    %c0_0 = arith.constant 0 : index
    %0 = vector.load %arg3[%c0, %c0_0] : memref<8x21xbf16, #tpu.memory_space<vmem>>, vector<8x21xbf16>
    %c0_1 = arith.constant 0 : index
    %c0_2 = arith.constant 0 : index
    %c0_3 = arith.constant 0 : index
    %1 = vector.load %arg2[%c0_1, %c0_2, %c0_3] : memref<1x21x128xbf16, #tpu.memory_space<vmem>>, vector<1x21x128xbf16>
    %2 = vector.shape_cast %1 : vector<1x21x128xbf16> to vector<21x128xbf16>
    %cst = arith.constant dense<0.000000e+00> : vector<8x128xf32>
    %3 = tpu.matmul %0, %2, %cst {dimension_numbers = #tpu.dot_dimension_numbers<[1], [0], [0], [1], [0, 0, 1, 1], [], []>} : vector<8x21xbf16>, vector<21x128xbf16>, vector<8x128xf32> -> vector<8x128xf32>
    %4 = arith.truncf %3 : vector<8x128xf32> to vector<8x128xbf16>
    %c0_4 = arith.constant 0 : index
    %c0_5 = arith.constant 0 : index
    %c0_6 = arith.constant 0 : index
    %5 = vector.load %arg4[%c0_4, %c0_5, %c0_6] : memref<1x8x128xbf16, #tpu.memory_space<vmem>>, vector<1x8x128xbf16>
    %6 = vector.shape_cast %5 : vector<1x8x128xbf16> to vector<8x128xbf16>
    %7 = vector.shape_cast %4 : vector<8x128xbf16> to vector<1x8x128xbf16>
    tpu.vector_store %arg4[%c0_4, %c0_5, %c0_6], %7 {strides = array<i32>} : memref<1x8x128xbf16, #tpu.memory_space<vmem>>, vector<1x8x128xbf16>,
    return
  }
  func.func @transform_0(%arg0: i32, %arg1: i32) -> (i32, i32, i32) {
    %c0_i32 = arith.constant 0 : i32
    %c0_i32_0 = arith.constant 0 : i32
    %c0_i32_1 = arith.constant 0 : i32
    return %arg0, %c0_i32, %c0_i32_0 : i32, i32, i32
  }
  func.func @transform_1(%arg0: i32, %arg1: i32) -> (i32, i32) {
    %c0_i32 = arith.constant 0 : i32
    %c0_i32_0 = arith.constant 0 : i32
    return %arg1, %c0_i32 : i32, i32
  }
  func.func @transform_2(%arg0: i32, %arg1: i32) -> (i32, i32, i32) {
    %c0_i32 = arith.constant 0 : i32
    %c0_i32_0 = arith.constant 0 : i32
    return %arg0, %arg1, %c0_i32 : i32, i32, i32
  }
}

module attributes {stable_mosaic.version = 11 : i64} {
  func.func @_fused_conv_kernel(%arg0: i32, %arg1: i32, %arg2: memref<1x80x128xbf16, #tpu.memory_space<vmem>>, %arg3: memref<8x80xbf16, #tpu.memory_space<vmem>>, %arg4: memref<1x8x128xbf16, #tpu.memory_space<vmem>>) attributes {dimension_semantics = [#tpu.dimension_semantics<parallel>, #tpu.dimension_semantics<parallel>], iteration_bounds = array<i64: 2, 1>, scalar_prefetch = 0 : i64, scratch_operands = 0 : i64, tpu.core_type = #tpu.core_type<tc>, window_params = [{transform_indices = @transform_0, window_bounds = array<i64: 1, 80, 128>}, {transform_indices = @transform_1, window_bounds = array<i64: 8, 80>}, {transform_indices = @transform_2, window_bounds = array<i64: 1, 8, 128>}]} {
    %c0 = arith.constant 0 : index
    %c0_0 = arith.constant 0 : index
    %0 = vector.load %arg3[%c0, %c0_0] : memref<8x80xbf16, #tpu.memory_space<vmem>>, vector<8x80xbf16>
    %c0_1 = arith.constant 0 : index
    %c0_2 = arith.constant 0 : index
    %c0_3 = arith.constant 0 : index
    %1 = vector.load %arg2[%c0_1, %c0_2, %c0_3] : memref<1x80x128xbf16, #tpu.memory_space<vmem>>, vector<1x80x128xbf16>
    %2 = vector.shape_cast %1 : vector<1x80x128xbf16> to vector<80x128xbf16>
    %cst = arith.constant dense<0.000000e+00> : vector<8x128xf32>
    %3 = tpu.matmul %0, %2, %cst {dimension_numbers = #tpu.dot_dimension_numbers<[1], [0], [0], [1], [0, 0, 1, 1], [], []>} : vector<8x80xbf16>, vector<80x128xbf16>, vector<8x128xf32> -> vector<8x128xf32>
    %cst_4 = arith.constant dense<0.000000e+00> : vector<8xf32>
    %4 = vector.multi_reduction <add>, %3, %cst_4 [1] : vector<8x128xf32> to vector<8xf32>
    %5 = vector.shape_cast %4 : vector<8xf32> to vector<8x1xf32>
    %cst_5 = arith.constant 7.812500e-03 : f32
    %6 = vector.broadcast %cst_5 : f32 to vector<8x1xf32>
    %7 = arith.mulf %5, %6 : vector<8x1xf32>
    %8 = vector.broadcast %7 : vector<8x1xf32> to vector<8x128xf32>
    %9 = arith.subf %3, %8 : vector<8x128xf32>
    %10 = arith.mulf %9, %9 : vector<8x128xf32>
    %cst_6 = arith.constant dense<0.000000e+00> : vector<8xf32>
    %11 = vector.multi_reduction <add>, %10, %cst_6 [1] : vector<8x128xf32> to vector<8xf32>
    %12 = vector.shape_cast %11 : vector<8xf32> to vector<8x1xf32>
    %cst_7 = arith.constant 7.812500e-03 : f32
    %13 = vector.broadcast %cst_7 : f32 to vector<8x1xf32>
    %14 = arith.mulf %12, %13 : vector<8x1xf32>
    %cst_8 = arith.constant 9.99999974E-6 : f32
    %15 = vector.broadcast %cst_8 : f32 to vector<8x1xf32>
    %16 = arith.addf %14, %15 : vector<8x1xf32>
    %17 = math.rsqrt %16 : vector<8x1xf32>
    %18 = vector.broadcast %17 : vector<8x1xf32> to vector<8x128xf32>
    %19 = arith.mulf %9, %18 : vector<8x128xf32>
    %cst_9 = arith.constant 0.000000e+00 : f32
    %20 = vector.broadcast %cst_9 : f32 to vector<8x128xf32>
    %21 = arith.maximumf %19, %20 : vector<8x128xf32>
    %22 = arith.truncf %21 : vector<8x128xf32> to vector<8x128xbf16>
    %c0_10 = arith.constant 0 : index
    %c0_11 = arith.constant 0 : index
    %c0_12 = arith.constant 0 : index
    %23 = vector.load %arg4[%c0_10, %c0_11, %c0_12] : memref<1x8x128xbf16, #tpu.memory_space<vmem>>, vector<1x8x128xbf16>
    %24 = vector.shape_cast %23 : vector<1x8x128xbf16> to vector<8x128xbf16>
    %25 = vector.shape_cast %22 : vector<8x128xbf16> to vector<1x8x128xbf16>
    tpu.vector_store %arg4[%c0_10, %c0_11, %c0_12], %25 {strides = array<i32>} : memref<1x8x128xbf16, #tpu.memory_space<vmem>>, vector<1x8x128xbf16>,
    return
  }
  func.func @transform_0(%arg0: i32, %arg1: i32) -> (i32, i32, i32) {
    %c0_i32 = arith.constant 0 : i32
    %c0_i32_0 = arith.constant 0 : i32
    %c0_i32_1 = arith.constant 0 : i32
    return %arg0, %c0_i32, %c0_i32_0 : i32, i32, i32
  }
  func.func @transform_1(%arg0: i32, %arg1: i32) -> (i32, i32) {
    %c0_i32 = arith.constant 0 : i32
    %c0_i32_0 = arith.constant 0 : i32
    return %arg1, %c0_i32 : i32, i32
  }
  func.func @transform_2(%arg0: i32, %arg1: i32) -> (i32, i32, i32) {
    %c0_i32 = arith.constant 0 : i32
    %c0_i32_0 = arith.constant 0 : i32
    return %arg0, %arg1, %c0_i32 : i32, i32, i32
  }
}

module attributes {stable_mosaic.version = 11 : i64} {
  func.func @_fused_conv_kernel(%arg0: i32, %arg1: i32, %arg2: memref<1x40x128xbf16, #tpu.memory_space<vmem>>, %arg3: memref<8x40xbf16, #tpu.memory_space<vmem>>, %arg4: memref<1x8x128xbf16, #tpu.memory_space<vmem>>, %arg5: memref<1x8x128xf32, #tpu.memory_space<vmem>>) attributes {dimension_semantics = [#tpu.dimension_semantics<parallel>, #tpu.dimension_semantics<parallel>], iteration_bounds = array<i64: 2, 1>, scalar_prefetch = 0 : i64, scratch_operands = 0 : i64, tpu.core_type = #tpu.core_type<tc>, window_params = [{transform_indices = @transform_0, window_bounds = array<i64: 1, 40, 128>}, {transform_indices = @transform_1, window_bounds = array<i64: 8, 40>}, {transform_indices = @transform_2, window_bounds = array<i64: 1, 8, 128>}, {transform_indices = @transform_3, window_bounds = array<i64: 1, 8, 128>}]} {
    %c0 = arith.constant 0 : index
    %c0_0 = arith.constant 0 : index
    %0 = vector.load %arg3[%c0, %c0_0] : memref<8x40xbf16, #tpu.memory_space<vmem>>, vector<8x40xbf16>
    %c0_1 = arith.constant 0 : index
    %c0_2 = arith.constant 0 : index
    %c0_3 = arith.constant 0 : index
    %1 = vector.load %arg2[%c0_1, %c0_2, %c0_3] : memref<1x40x128xbf16, #tpu.memory_space<vmem>>, vector<1x40x128xbf16>
    %2 = vector.shape_cast %1 : vector<1x40x128xbf16> to vector<40x128xbf16>
    %cst = arith.constant dense<0.000000e+00> : vector<8x128xf32>
    %3 = tpu.matmul %0, %2, %cst {dimension_numbers = #tpu.dot_dimension_numbers<[1], [0], [0], [1], [0, 0, 1, 1], [], []>} : vector<8x40xbf16>, vector<40x128xbf16>, vector<8x128xf32> -> vector<8x128xf32>
    %cst_4 = arith.constant dense<0.000000e+00> : vector<8xf32>
    %4 = vector.multi_reduction <add>, %3, %cst_4 [1] : vector<8x128xf32> to vector<8xf32>
    %5 = vector.shape_cast %4 : vector<8xf32> to vector<8x1xf32>
    %cst_5 = arith.constant 7.812500e-03 : f32
    %6 = vector.broadcast %cst_5 : f32 to vector<8x1xf32>
    %7 = arith.mulf %5, %6 : vector<8x1xf32>
    %8 = vector.broadcast %7 : vector<8x1xf32> to vector<8x128xf32>
    %9 = arith.subf %3, %8 : vector<8x128xf32>
    %10 = arith.mulf %9, %9 : vector<8x128xf32>
    %cst_6 = arith.constant dense<0.000000e+00> : vector<8xf32>
    %11 = vector.multi_reduction <add>, %10, %cst_6 [1] : vector<8x128xf32> to vector<8xf32>
    %12 = vector.shape_cast %11 : vector<8xf32> to vector<8x1xf32>
    %cst_7 = arith.constant 7.812500e-03 : f32
    %13 = vector.broadcast %cst_7 : f32 to vector<8x1xf32>
    %14 = arith.mulf %12, %13 : vector<8x1xf32>
    %cst_8 = arith.constant 9.99999974E-6 : f32
    %15 = vector.broadcast %cst_8 : f32 to vector<8x1xf32>
    %16 = arith.addf %14, %15 : vector<8x1xf32>
    %17 = math.rsqrt %16 : vector<8x1xf32>
    %18 = vector.broadcast %17 : vector<8x1xf32> to vector<8x128xf32>
    %19 = arith.mulf %9, %18 : vector<8x128xf32>
    %c0_9 = arith.constant 0 : index
    %c0_10 = arith.constant 0 : index
    %c0_11 = arith.constant 0 : index
    %20 = vector.load %arg4[%c0_9, %c0_10, %c0_11] : memref<1x8x128xbf16, #tpu.memory_space<vmem>>, vector<1x8x128xbf16>
    %21 = vector.shape_cast %20 : vector<1x8x128xbf16> to vector<8x128xbf16>
    %22 = arith.extf %21 : vector<8x128xbf16> to vector<8x128xf32>
    %23 = arith.addf %19, %22 : vector<8x128xf32>
    %cst_12 = arith.constant 0.000000e+00 : f32
    %24 = vector.broadcast %cst_12 : f32 to vector<8x128xf32>
    %25 = arith.maximumf %23, %24 : vector<8x128xf32>
    %c0_13 = arith.constant 0 : index
    %c0_14 = arith.constant 0 : index
    %c0_15 = arith.constant 0 : index
    %26 = vector.load %arg5[%c0_13, %c0_14, %c0_15] : memref<1x8x128xf32, #tpu.memory_space<vmem>>, vector<1x8x128xf32>
    %27 = vector.shape_cast %26 : vector<1x8x128xf32> to vector<8x128xf32>
    %28 = vector.shape_cast %25 : vector<8x128xf32> to vector<1x8x128xf32>
    tpu.vector_store %arg5[%c0_13, %c0_14, %c0_15], %28 {strides = array<i32>} : memref<1x8x128xf32, #tpu.memory_space<vmem>>, vector<1x8x128xf32>,
    return
  }
  func.func @transform_0(%arg0: i32, %arg1: i32) -> (i32, i32, i32) {
    %c0_i32 = arith.constant 0 : i32
    %c0_i32_0 = arith.constant 0 : i32
    %c0_i32_1 = arith.constant 0 : i32
    return %arg0, %c0_i32, %c0_i32_0 : i32, i32, i32
  }
  func.func @transform_1(%arg0: i32, %arg1: i32) -> (i32, i32) {
    %c0_i32 = arith.constant 0 : i32
    %c0_i32_0 = arith.constant 0 : i32
    return %arg1, %c0_i32 : i32, i32
  }
  func.func @transform_2(%arg0: i32, %arg1: i32) -> (i32, i32, i32) {
    %c0_i32 = arith.constant 0 : i32
    %c0_i32_0 = arith.constant 0 : i32
    return %arg0, %arg1, %c0_i32 : i32, i32, i32
  }
  func.func @transform_3(%arg0: i32, %arg1: i32) -> (i32, i32, i32) {
    %c0_i32 = arith.constant 0 : i32
    %c0_i32_0 = arith.constant 0 : i32
    return %arg0, %arg1, %c0_i32 : i32, i32, i32
  }
}

</mosaic_0001>

<llo_original>
// kernel: upconv_forward.4
$region0: #{upconv_forward.4}
  #allocation0 [shape = 'u32[]', space=smem, size = 0x4, offset = 0x4, fixed_abs, tag = 'smem constant byte address 0x4 - core index']
  #allocation1 [shape = 'u32[144,128]{1,0:T(1,128)}', space=vmem, size = 0x12000, scoped, tag = 'internal scratch']
  %s0 = inlined_call_operand.vmem [shape: bf16[2,80,128], index: 0, kind: input, shape index: {}]
  %s1 = inlined_call_operand.vmem [shape: bf16[8,80], index: 1, kind: input, shape index: {}]
  %s2 = inlined_call_operand.vmem [shape: bf16[2,8,128], index: 2, kind: output, shape index: {}]
  %s3 = sld [smem:[#allocation0]]
  $region41: #{upconv_forward.4} parent=0
    _
  %s5 = ssub.s32 1, %s3
  %s6 = scalar_select 0, %s5, %s3
  loop: start=0, step=1, limit=4
  $region2: #{upconv_forward.4} parent=0 // loop_pre_header
    _
  $region3: #{upconv_forward.4} parent=0 // loop_header
    %s8 = sphi 0, %s12
    %p9 = scmp.ge.s32.totalorder %s8, 4
    %s15 = sphi 0, %s27
    %s16 = sphi 0, %s23
    %s17 = sphi 0, %s15
    %s18 = sphi 0, %s16
    %s19 = sphi 0, %s17
    %s20 = sphi 0, %s18
    %s30 = sphi 0, %s32
    %s33 = sphi 0, %s30
    %s34 = sphi 0, %s33
    %s50 = sphi 0, %s34
    %s56 = sphi 0, %s58
    %s59 = sphi 0, %s56
    %s60 = sphi 0, %s59
    %s76 = sphi 0, %s60
    %s84 = sphi 0, %s86
    %s87 = sphi 0, %s84
    %s88 = sphi 0, %s87
    %s104 = sphi 0, %s88
  $region4: #{upconv_forward.4} parent=0 // loop_header_branch
    %11 = sbr.rel (%p9) target = $region8
  $region5: #{upconv_forward.4} parent=0 // loop_body
    %s13 = ssub.s32 %s8, 1
    %s14 = ssub.s32 %s8, 2
    %s21 = sadd.s32 1, %s16
    %p22 = scmp.ge.s32.totalorder %s21, 1
    %s23 = scalar_select %p22, 0, %s21
    %s24 = sadd.s32 1, %s15
    %s25 = scalar_select %p22, %s24, %s15
    %p26 = scmp.ge.s32.totalorder %s25, 2
    %s27 = scalar_select %p26, 0, %s25
    %s28 = ssub.s32 %s15, %s27
    %p29 = scmp.eq.s32.totalorder %s28, 0
    %s31 = sadd.s32 %s30, 1
    %s32 = scalar_select %p29, %s30, %s31
    %p35 = pneg %p29
    %p36 = scmp.eq.s32.totalorder %s8, 1
    %p37 = por %p35, %p36
    %p38 = scmp.ne.s32.totalorder %s30, %s33
    %p39 = scmp.eq.s32.totalorder %s8, 0
    %p40 = por %p38, %p39
    %p41 = scmp.ne.s32.totalorder %s30, %s33
    %p42 = scmp.eq.s32.totalorder %s13, 1
    %p43 = por %p41, %p42
    %p44 = scmp.ne.s32.totalorder %s33, %s34
    %p45 = scmp.eq.s32.totalorder %s13, 0
    %p46 = por %p44, %p45
    %p47 = scmp.ne.s32.totalorder %s33, %s34
    %p48 = scmp.eq.s32.totalorder %s14, 1
    %p49 = por %p47, %p48
    %p51 = scmp.ne.s32.totalorder %s34, %s50
    %p52 = scmp.eq.s32.totalorder %s14, 0
    %p53 = por %p51, %p52
    %s54 = ssub.s32 %s16, %s23
    %p55 = scmp.eq.s32.totalorder %s54, 0
    %s57 = sadd.s32 %s56, 1
    %s58 = scalar_select %p55, %s56, %s57
    %p61 = pneg %p55
    %p62 = scmp.eq.s32.totalorder %s8, 1
    %p63 = por %p61, %p62
    %p64 = scmp.ne.s32.totalorder %s56, %s59
    %p65 = scmp.eq.s32.totalorder %s8, 0
    %p66 = por %p64, %p65
    %p67 = scmp.ne.s32.totalorder %s56, %s59
    %p68 = scmp.eq.s32.totalorder %s13, 1
    %p69 = por %p67, %p68
    %p70 = scmp.ne.s32.totalorder %s59, %s60
    %p71 = scmp.eq.s32.totalorder %s13, 0
    %p72 = por %p70, %p71
    %p73 = scmp.ne.s32.totalorder %s59, %s60
    %p74 = scmp.eq.s32.totalorder %s14, 1
    %p75 = por %p73, %p74
    %p77 = scmp.ne.s32.totalorder %s60, %s76
    %p78 = scmp.eq.s32.totalorder %s14, 0
    %p79 = por %p77, %p78
    %s80 = ssub.s32 %s15, %s27
    %s81 = ssub.s32 %s16, %s23
    %s82 = sor.u32 %s80, %s81
    %p83 = scmp.eq.s32.totalorder %s82, 0
    %s85 = sadd.s32 %s84, 1
    %s86 = scalar_select %p83, %s84, %s85
    %p89 = pneg %p83
    %p90 = scmp.eq.s32.totalorder %s8, 1
    %p91 = por %p89, %p90
    %p92 = scmp.ne.s32.totalorder %s84, %s87
    %p93 = scmp.eq.s32.totalorder %s8, 0
    %p94 = por %p92, %p93
    %p95 = scmp.ne.s32.totalorder %s84, %s87
    %p96 = scmp.eq.s32.totalorder %s13, 1
    %p97 = por %p95, %p96
    %p98 = scmp.ne.s32.totalorder %s87, %s88
    %p99 = scmp.eq.s32.totalorder %s13, 0
    %p100 = por %p98, %p99
    %p101 = scmp.ne.s32.totalorder %s87, %s88
    %p102 = scmp.eq.s32.totalorder %s14, 1
    %p103 = por %p101, %p102
    %p105 = scmp.ne.s32.totalorder %s88, %s104
    %p106 = scmp.eq.s32.totalorder %s14, 0
    %p107 = por %p105, %p106
    %p108 = scmp.le.s32.totalorder 1, %s8
    %p109 = scmp.lt.s32.totalorder %s8, 3
    %p110 = pnand %p108, %p109
    %p111 = pneg %p110
    // Predicated region
    $region9: #{upconv_forward.4} parent=5 // pred_check
      _
    $region10: #{upconv_forward.4} parent=5 // pred_check_branch
      %113 = sbr.rel (%p110) target = $region12
    $region11: #{upconv_forward.4} parent=5 // pred_region
      %s114 = ssub.s32 %s8, 1
      // Predicated region
      $region13: #{upconv_forward.4} parent=11 // pred_check
        %p115 = pneg %p72
      $region14: #{upconv_forward.4} parent=11 // pred_check_branch
        %117 = sbr.rel (%p115) target = $region16
      $region15: #{upconv_forward.4} parent=11 // pred_region
        %p118 = scmp.lt.s32.totalorder %s18, 0
        %s119 = scalar_select %p118, %s18, 0
        %s120 = smul.addr %s119, 4
        %s121 = scalar_lea.vmem %s1, %s120
      $region16: #{upconv_forward.4} parent=11 // pred_fallthru
        _
    $region12: #{upconv_forward.4} parent=5 // pred_fallthru
      _
    %p122 = scmp.lt.s32.totalorder %s8, 2
    // Predicated region
    $region17: #{upconv_forward.4} parent=5 // pred_check
      %p123 = pneg %p122
    $region18: #{upconv_forward.4} parent=5 // pred_check_branch
      %125 = sbr.rel (%p123) target = $region20
    $region19: #{upconv_forward.4} parent=5 // pred_region
      // Predicated region
      $region21: #{upconv_forward.4} parent=19 // pred_check
        %p126 = pneg %p40
      $region22: #{upconv_forward.4} parent=19 // pred_check_branch
        %128 = sbr.rel (%p126) target = $region24
      $region23: #{upconv_forward.4} parent=19 // pred_region
        %p129 = scmp.lt.s32.totalorder %s15, 1
        %s130 = scalar_select %p129, %s15, 1
        %s131 = smul.addr %s130, 10
        %s132 = smul.addr %s131, 4
        %s133 = scalar_lea.vmem %s0, %s132
      $region24: #{upconv_forward.4} parent=19 // pred_fallthru
        _
    $region20: #{upconv_forward.4} parent=5 // pred_fallthru
      _
    %p134 = scmp.le.s32.totalorder 1, %s8
    %p135 = scmp.lt.s32.totalorder %s8, 3
    %p136 = pnand %p134, %p135
    %p137 = pneg %p136
    // Predicated region
    $region25: #{upconv_forward.4} parent=5 // pred_check
      _
    $region26: #{upconv_forward.4} parent=5 // pred_check_branch
      %139 = sbr.rel (%p136) target = $region28
    $region27: #{upconv_forward.4} parent=5 // pred_region
      %s140 = ssub.s32 %s8, 1
      %p141 = scmp.lt.s32.totalorder %s17, 1
      %s142 = scalar_select %p141, %s17, 1
      %s143 = smul.addr %s142, 10
      %s144 = smul.addr %s143, 4
      %s145 = scalar_lea.vmem %s0, %s144
      %p146 = pneg %p46
      %p147 = pneg %p43
      %p148 = scmp.lt.s32.totalorder %s18, 0
      %s149 = scalar_select %p148, %s18, 0
      %s150 = smul.addr %s149, 4
      %s151 = scalar_lea.vmem %s1, %s150
      %p152 = pneg %p72
      %p153 = pneg %p69
      %p154 = pneg %p100
      %p155 = pneg %p97
      %p156 = scmp.lt.s32.totalorder %s17, 1
      %s157 = scalar_select %p156, %s17, 1
      %p158 = scmp.lt.s32.totalorder %s18, 0
      %s159 = scalar_select %p158, %s18, 0
      %s160 = sadd.s32 %s159, %s157
      %s161 = smul.addr %s160, 4
      %s162 = scalar_lea.vmem %s2, %s161
      %p163 = scmp.lt.s32.totalorder %s17, 1
      %s164 = scalar_select %p163, %s17, 1
      %s165 = smul.addr %s164, 10
      %s166 = smul.addr %s165, 4
      %s167 = scalar_lea.vmem %s0, %s166
      %p168 = scmp.lt.s32.totalorder %s18, 0
      %s169 = scalar_select %p168, %s18, 0
      %s170 = smul.addr %s169, 4
      %s171 = scalar_lea.vmem %s1, %s170
      %p172 = scmp.lt.s32.totalorder %s17, 1
      %s173 = scalar_select %p172, %s17, 1
      %p174 = scmp.lt.s32.totalorder %s18, 0
      %s175 = scalar_select %p174, %s18, 0
      %s176 = sadd.s32 %s175, %s173
      %s177 = smul.addr %s176, 4
      %s178 = scalar_lea.vmem %s2, %s177
      %v180 = vld [vmem:[%s171] sm:$0xf]
      %v181 = vld [vmem:[%s167] sm:$0xf]
      %v182 = vld [vmem:[%s167 + $0x4] sm:$0xf]
      %v183 = vld [vmem:[%s167 + $0x8] sm:$0xf]
      %v184 = vld [vmem:[%s167 + $0xc] sm:$0xf]
      %v185 = vld [vmem:[%s167 + $0x10] sm:$0xf]
      %v186 = vld [vmem:[%s167 + $0x14] sm:$0xf]
      %v187 = vld [vmem:[%s167 + $0x18] sm:$0xf]
      %v188 = vld [vmem:[%s167 + $0x1c] sm:$0xf]
      %v189 = vld [vmem:[%s167 + $0x20] sm:$0xf]
      %v190 = vld [vmem:[%s167 + $0x24] sm:$0xf]
      %v201 = vunpack.c.l.b16 %v181
      %v202 = vunpack.c.l.b16 %v182
      %v203 = vunpack.c.l.b16 %v183
      %v204 = vunpack.c.l.b16 %v184
      %v205 = vunpack.c.l.b16 %v185
      %v206 = vunpack.c.l.b16 %v186
      %v207 = vunpack.c.l.b16 %v187
      %v208 = vunpack.c.l.b16 %v188
      %v209 = vunpack.c.l.b16 %v189
      %v210 = vunpack.c.l.b16 %v190
      %v211 = vpack.c.b16 %v202, %v201
      %v212 = vpack.c.b16 %v204, %v203
      %v213 = vpack.c.b16 %v206, %v205
      %v214 = vpack.c.b16 %v208, %v207
      %v215 = vpack.c.b16 %v210, %v209
      %vm221 = vcmask 654336
      %v223 = vsel %vm221, %v180, 0
      %225 = vmatprep.subr.bf16.mxu0 0
      %226 = vmatpush1.bf16.msra.mxu0 %v211
      %227 = vmatprep.subr.bf16.mxu0 0
      %228 = vmatpush1.bf16.msra.mxu0 %v212
      %229 = vmatprep.subr.bf16.mxu0 0
      %230 = vmatpush1.bf16.msra.mxu0 %v213
      %231 = vmatprep.subr.bf16.mxu0 0
      %232 = vmatpush1.bf16.msra.mxu0 %v214
      %233 = vmatprep.subr.bf16.mxu0 0
      %234 = vmatpush1.bf16.msra.mxu0 %v215
      %235 = vmatprep.subr.bf16.mxu0 0
      %236 = vmatpush1.bf16.msra.mxu0 0
      %237 = vmatprep.subr.bf16.mxu0 0
      %238 = vmatpush1.bf16.msra.mxu0 0
      %239 = vmatprep.subr.bf16.mxu0 0
      %240 = vmatpush1.bf16.msra.mxu0 0
      %241 = vmatprep.subr.bf16.mxu0 0
      %242 = vmatpush1.bf16.msra.mxu0 0
      %243 = vmatprep.subr.bf16.mxu0 0
      %244 = vmatpush1.bf16.msra.mxu0 0
      %245 = vmatprep.subr.bf16.mxu0 0
      %246 = vmatpush1.bf16.msra.mxu0 0
      %247 = vmatprep.subr.bf16.mxu0 0
      %248 = vmatpush1.bf16.msra.mxu0 0
      %249 = vmatprep.subr.bf16.mxu0 0
      %250 = vmatpush1.bf16.msra.mxu0 0
      %251 = vmatprep.subr.bf16.mxu0 0
      %252 = vmatpush1.bf16.msra.mxu0 0
      %253 = vmatprep.subr.bf16.mxu0 0
      %254 = vmatpush1.bf16.msra.mxu0 0
      %255 = vmatprep.subr.bf16.mxu0 0
      %256 = vmatpush1.bf16.msra.mxu0 0
      %257 = vmatprep.mubr.bf16.mxu0 0
      %258 = vmatmul.mubr.bf16.gmra.mrb[0].mxu0 %v223
      %v259 = vpop.f32.mrb[0].mxu0
      %v260 = vadd.f32 0.0, %v259
      %v261 = vpop.f32.mrb[0].mxu0
      %v262 = vpop.f32.mrb[0].mxu0
      %v263 = vpop.f32.mrb[0].mxu0
      %264 = vdwg.mxu0
      %265 = vadd.xlane.f32.xlu0 %v260
      %v266 = vpop.xlane.xlu0 %265
      %v267 = vmul.f32 %v266, 0.0078125
      %v268 = vsub.f32 %v260, %v267
      %v269 = vmul.f32 %v268, %v268
      %270 = vadd.xlane.f32.xlu0 %v269
      %v271 = vpop.xlane.xlu0 %270
      %v272 = vmul.f32 %v271, 0.0078125
      %v273 = vadd.f32 %v272, 1e-05
      %v274 = vrsqrt.pop %v273
      %v275 = vmul.f32 %v268, %v274
      %v276 = vmax.f32 %v275, 0.0
      %v277 = vpack.c.bf16 %v276, %v276
      %278 = vst [vmem:[%s178] sm:$0xf] %v277
      %p279 = scmp.lt.s32.totalorder %s17, 1
      %s280 = scalar_select %p279, %s17, 1
      %p281 = scmp.lt.s32.totalorder %s18, 0
      %s282 = scalar_select %p281, %s18, 0
      %s283 = sadd.s32 %s282, %s280
      %s284 = smul.addr %s283, 4
      %s285 = scalar_lea.vmem %s2, %s284
      // Predicated region
      $region29: #{upconv_forward.4} parent=27 // pred_check
        %p286 = pneg %p97
      $region30: #{upconv_forward.4} parent=27 // pred_check_branch
        %288 = sbr.rel (%p286) target = $region32
      $region31: #{upconv_forward.4} parent=27 // pred_region
        _
      $region32: #{upconv_forward.4} parent=27 // pred_fallthru
        _
    $region28: #{upconv_forward.4} parent=5 // pred_fallthru
      _
    %p289 = scmp.le.s32.totalorder 2, %s8
    // Predicated region
    $region33: #{upconv_forward.4} parent=5 // pred_check
      %p290 = pneg %p289
    $region34: #{upconv_forward.4} parent=5 // pred_check_branch
      %292 = sbr.rel (%p290) target = $region36
    $region35: #{upconv_forward.4} parent=5 // pred_region
      %s293 = ssub.s32 %s8, 2
      // Predicated region
      $region37: #{upconv_forward.4} parent=35 // pred_check
        %p294 = pneg %p103
      $region38: #{upconv_forward.4} parent=35 // pred_check_branch
        %296 = sbr.rel (%p294) target = $region40
      $region39: #{upconv_forward.4} parent=35 // pred_region
        %p297 = scmp.lt.s32.totalorder %s19, 1
        %s298 = scalar_select %p297, %s19, 1
        %p299 = scmp.lt.s32.totalorder %s20, 0
        %s300 = scalar_select %p299, %s20, 0
        %s301 = sadd.s32 %s300, %s298
        %s302 = smul.addr %s301, 4
        %s303 = scalar_lea.vmem %s2, %s302
      $region40: #{upconv_forward.4} parent=35 // pred_fallthru
        _
    $region36: #{upconv_forward.4} parent=5 // pred_fallthru
      _
  $region6: #{upconv_forward.4} parent=0 // loop_footer
    %s12 = sadd.s32 1, %s8
  $region7: #{upconv_forward.4} parent=0 // loop_footer_branch
    %7 = sbr.rel target = $region3
  $region8: #{upconv_forward.4} parent=0 // loop_exit
    _

// kernel: upconv_forward.3
$region0: #{upconv_forward.3}
  #allocation0 [shape = 'u32[]', space=smem, size = 0x4, offset = 0x4, fixed_abs, tag = 'smem constant byte address 0x4 - core index']
  #allocation1 [shape = 'u32[144,128]{1,0:T(1,128)}', space=vmem, size = 0x12000, scoped, tag = 'internal scratch']
  %s0 = inlined_call_operand.vmem [shape: bf16[2,21,128], index: 0, kind: input, shape index: {}]
  %s1 = inlined_call_operand.vmem [shape: bf16[8,21], index: 1, kind: input, shape index: {}]
  %s2 = inlined_call_operand.vmem [shape: bf16[2,8,128], index: 2, kind: output, shape index: {}]
  %s3 = sld [smem:[#allocation0]]
  $region41: #{upconv_forward.3} parent=0
    _
  %s5 = ssub.s32 1, %s3
  %s6 = scalar_select 0, %s5, %s3
  loop: start=0, step=1, limit=4
  $region2: #{upconv_forward.3} parent=0 // loop_pre_header
    _
  $region3: #{upconv_forward.3} parent=0 // loop_header
    %s8 = sphi 0, %s12
    %p9 = scmp.ge.s32.totalorder %s8, 4
    %s15 = sphi 0, %s27
    %s16 = sphi 0, %s23
    %s17 = sphi 0, %s15
    %s18 = sphi 0, %s16
    %s19 = sphi 0, %s17
    %s20 = sphi 0, %s18
    %s30 = sphi 0, %s32
    %s33 = sphi 0, %s30
    %s34 = sphi 0, %s33
    %s50 = sphi 0, %s34
    %s56 = sphi 0, %s58
    %s59 = sphi 0, %s56
    %s60 = sphi 0, %s59
    %s76 = sphi 0, %s60
    %s84 = sphi 0, %s86
    %s87 = sphi 0, %s84
    %s88 = sphi 0, %s87
    %s104 = sphi 0, %s88
  $region4: #{upconv_forward.3} parent=0 // loop_header_branch
    %11 = sbr.rel (%p9) target = $region8
  $region5: #{upconv_forward.3} parent=0 // loop_body
    %s13 = ssub.s32 %s8, 1
    %s14 = ssub.s32 %s8, 2
    %s21 = sadd.s32 1, %s16
    %p22 = scmp.ge.s32.totalorder %s21, 1
    %s23 = scalar_select %p22, 0, %s21
    %s24 = sadd.s32 1, %s15
    %s25 = scalar_select %p22, %s24, %s15
    %p26 = scmp.ge.s32.totalorder %s25, 2
    %s27 = scalar_select %p26, 0, %s25
    %s28 = ssub.s32 %s15, %s27
    %p29 = scmp.eq.s32.totalorder %s28, 0
    %s31 = sadd.s32 %s30, 1
    %s32 = scalar_select %p29, %s30, %s31
    %p35 = pneg %p29
    %p36 = scmp.eq.s32.totalorder %s8, 1
    %p37 = por %p35, %p36
    %p38 = scmp.ne.s32.totalorder %s30, %s33
    %p39 = scmp.eq.s32.totalorder %s8, 0
    %p40 = por %p38, %p39
    %p41 = scmp.ne.s32.totalorder %s30, %s33
    %p42 = scmp.eq.s32.totalorder %s13, 1
    %p43 = por %p41, %p42
    %p44 = scmp.ne.s32.totalorder %s33, %s34
    %p45 = scmp.eq.s32.totalorder %s13, 0
    %p46 = por %p44, %p45
    %p47 = scmp.ne.s32.totalorder %s33, %s34
    %p48 = scmp.eq.s32.totalorder %s14, 1
    %p49 = por %p47, %p48
    %p51 = scmp.ne.s32.totalorder %s34, %s50
    %p52 = scmp.eq.s32.totalorder %s14, 0
    %p53 = por %p51, %p52
    %s54 = ssub.s32 %s16, %s23
    %p55 = scmp.eq.s32.totalorder %s54, 0
    %s57 = sadd.s32 %s56, 1
    %s58 = scalar_select %p55, %s56, %s57
    %p61 = pneg %p55
    %p62 = scmp.eq.s32.totalorder %s8, 1
    %p63 = por %p61, %p62
    %p64 = scmp.ne.s32.totalorder %s56, %s59
    %p65 = scmp.eq.s32.totalorder %s8, 0
    %p66 = por %p64, %p65
    %p67 = scmp.ne.s32.totalorder %s56, %s59
    %p68 = scmp.eq.s32.totalorder %s13, 1
    %p69 = por %p67, %p68
    %p70 = scmp.ne.s32.totalorder %s59, %s60
    %p71 = scmp.eq.s32.totalorder %s13, 0
    %p72 = por %p70, %p71
    %p73 = scmp.ne.s32.totalorder %s59, %s60
    %p74 = scmp.eq.s32.totalorder %s14, 1
    %p75 = por %p73, %p74
    %p77 = scmp.ne.s32.totalorder %s60, %s76
    %p78 = scmp.eq.s32.totalorder %s14, 0
    %p79 = por %p77, %p78
    %s80 = ssub.s32 %s15, %s27
    %s81 = ssub.s32 %s16, %s23
    %s82 = sor.u32 %s80, %s81
    %p83 = scmp.eq.s32.totalorder %s82, 0
    %s85 = sadd.s32 %s84, 1
    %s86 = scalar_select %p83, %s84, %s85
    %p89 = pneg %p83
    %p90 = scmp.eq.s32.totalorder %s8, 1
    %p91 = por %p89, %p90
    %p92 = scmp.ne.s32.totalorder %s84, %s87
    %p93 = scmp.eq.s32.totalorder %s8, 0
    %p94 = por %p92, %p93
    %p95 = scmp.ne.s32.totalorder %s84, %s87
    %p96 = scmp.eq.s32.totalorder %s13, 1
    %p97 = por %p95, %p96
    %p98 = scmp.ne.s32.totalorder %s87, %s88
    %p99 = scmp.eq.s32.totalorder %s13, 0
    %p100 = por %p98, %p99
    %p101 = scmp.ne.s32.totalorder %s87, %s88
    %p102 = scmp.eq.s32.totalorder %s14, 1
    %p103 = por %p101, %p102
    %p105 = scmp.ne.s32.totalorder %s88, %s104
    %p106 = scmp.eq.s32.totalorder %s14, 0
    %p107 = por %p105, %p106
    %p108 = scmp.le.s32.totalorder 1, %s8
    %p109 = scmp.lt.s32.totalorder %s8, 3
    %p110 = pnand %p108, %p109
    %p111 = pneg %p110
    // Predicated region
    $region9: #{upconv_forward.3} parent=5 // pred_check
      _
    $region10: #{upconv_forward.3} parent=5 // pred_check_branch
      %113 = sbr.rel (%p110) target = $region12
    $region11: #{upconv_forward.3} parent=5 // pred_region
      %s114 = ssub.s32 %s8, 1
      // Predicated region
      $region13: #{upconv_forward.3} parent=11 // pred_check
        %p115 = pneg %p72
      $region14: #{upconv_forward.3} parent=11 // pred_check_branch
        %117 = sbr.rel (%p115) target = $region16
      $region15: #{upconv_forward.3} parent=11 // pred_region
        %p118 = scmp.lt.s32.totalorder %s18, 0
        %s119 = scalar_select %p118, %s18, 0
        %s120 = smul.addr %s119, 4
        %s121 = scalar_lea.vmem %s1, %s120
      $region16: #{upconv_forward.3} parent=11 // pred_fallthru
        _
    $region12: #{upconv_forward.3} parent=5 // pred_fallthru
      _
    %p122 = scmp.lt.s32.totalorder %s8, 2
    // Predicated region
    $region17: #{upconv_forward.3} parent=5 // pred_check
      %p123 = pneg %p122
    $region18: #{upconv_forward.3} parent=5 // pred_check_branch
      %125 = sbr.rel (%p123) target = $region20
    $region19: #{upconv_forward.3} parent=5 // pred_region
      // Predicated region
      $region21: #{upconv_forward.3} parent=19 // pred_check
        %p126 = pneg %p40
      $region22: #{upconv_forward.3} parent=19 // pred_check_branch
        %128 = sbr.rel (%p126) target = $region24
      $region23: #{upconv_forward.3} parent=19 // pred_region
        %p129 = scmp.lt.s32.totalorder %s15, 1
        %s130 = scalar_select %p129, %s15, 1
        %s131 = smul.addr %s130, 3
        %s132 = smul.addr %s131, 4
        %s133 = scalar_lea.vmem %s0, %s132
      $region24: #{upconv_forward.3} parent=19 // pred_fallthru
        _
    $region20: #{upconv_forward.3} parent=5 // pred_fallthru
      _
    %p134 = scmp.le.s32.totalorder 1, %s8
    %p135 = scmp.lt.s32.totalorder %s8, 3
    %p136 = pnand %p134, %p135
    %p137 = pneg %p136
    // Predicated region
    $region25: #{upconv_forward.3} parent=5 // pred_check
      _
    $region26: #{upconv_forward.3} parent=5 // pred_check_branch
      %139 = sbr.rel (%p136) target = $region28
    $region27: #{upconv_forward.3} parent=5 // pred_region
      %s140 = ssub.s32 %s8, 1
      %p141 = scmp.lt.s32.totalorder %s17, 1
      %s142 = scalar_select %p141, %s17, 1
      %s143 = smul.addr %s142, 3
      %s144 = smul.addr %s143, 4
      %s145 = scalar_lea.vmem %s0, %s144
      %p146 = pneg %p46
      %p147 = pneg %p43
      %p148 = scmp.lt.s32.totalorder %s18, 0
      %s149 = scalar_select %p148, %s18, 0
      %s150 = smul.addr %s149, 4
      %s151 = scalar_lea.vmem %s1, %s150
      %p152 = pneg %p72
      %p153 = pneg %p69
      %p154 = pneg %p100
      %p155 = pneg %p97
      %p156 = scmp.lt.s32.totalorder %s17, 1
      %s157 = scalar_select %p156, %s17, 1
      %p158 = scmp.lt.s32.totalorder %s18, 0
      %s159 = scalar_select %p158, %s18, 0
      %s160 = sadd.s32 %s159, %s157
      %s161 = smul.addr %s160, 4
      %s162 = scalar_lea.vmem %s2, %s161
      %p163 = scmp.lt.s32.totalorder %s17, 1
      %s164 = scalar_select %p163, %s17, 1
      %s165 = smul.addr %s164, 3
      %s166 = smul.addr %s165, 4
      %s167 = scalar_lea.vmem %s0, %s166
      %p168 = scmp.lt.s32.totalorder %s18, 0
      %s169 = scalar_select %p168, %s18, 0
      %s170 = smul.addr %s169, 4
      %s171 = scalar_lea.vmem %s1, %s170
      %p172 = scmp.lt.s32.totalorder %s17, 1
      %s173 = scalar_select %p172, %s17, 1
      %p174 = scmp.lt.s32.totalorder %s18, 0
      %s175 = scalar_select %p174, %s18, 0
      %s176 = sadd.s32 %s175, %s173
      %s177 = smul.addr %s176, 4
      %s178 = scalar_lea.vmem %s2, %s177
      %v180 = vld [vmem:[%s171] sm:$0xf]
      %v181 = vld [vmem:[%s167] sm:$0xf]
      %v182 = vld [vmem:[%s167 + $0x4] sm:$0xf]
      %v183 = vld [vmem:[%s167 + $0x8] sm:$0x7]
      %v187 = vunpack.c.l.b16 %v181
      %v188 = vunpack.c.l.b16 %v182
      %v189 = vunpack.c.l.b16 %v183
      %v190 = vpack.c.b16 %v188, %v187
      %v191 = vpack.c.b16 %v189, %v189
      %vm193 = vcmask 171008
      %v195 = vsel %vm193, %v180, 0
      %vm197 = vcmask 1041408
      %vm198 = vcmask 1042432
      %v199 = vsel %vm197, 4294967295, 65535
      %v200 = vsel %vm198, %v199, 0
      %v202 = vand.u32 %v191, %v200
      %204 = vmatprep.subr.bf16.mxu0 0
      %205 = vmatpush1.bf16.msra.mxu0 %v190
      %206 = vmatprep.subr.bf16.mxu0 0
      %207 = vmatpush1.bf16.msra.mxu0 %v202
      %208 = vmatprep.subr.bf16.mxu0 0
      %209 = vmatpush1.bf16.msra.mxu0 0
      %210 = vmatprep.subr.bf16.mxu0 0
      %211 = vmatpush1.bf16.msra.mxu0 0
      %212 = vmatprep.subr.bf16.mxu0 0
      %213 = vmatpush1.bf16.msra.mxu0 0
      %214 = vmatprep.subr.bf16.mxu0 0
      %215 = vmatpush1.bf16.msra.mxu0 0
      %216 = vmatprep.subr.bf16.mxu0 0
      %217 = vmatpush1.bf16.msra.mxu0 0
      %218 = vmatprep.subr.bf16.mxu0 0
      %219 = vmatpush1.bf16.msra.mxu0 0
      %220 = vmatprep.subr.bf16.mxu0 0
      %221 = vmatpush1.bf16.msra.mxu0 0
      %222 = vmatprep.subr.bf16.mxu0 0
      %223 = vmatpush1.bf16.msra.mxu0 0
      %224 = vmatprep.subr.bf16.mxu0 0
      %225 = vmatpush1.bf16.msra.mxu0 0
      %226 = vmatprep.subr.bf16.mxu0 0
      %227 = vmatpush1.bf16.msra.mxu0 0
      %228 = vmatprep.subr.bf16.mxu0 0
      %229 = vmatpush1.bf16.msra.mxu0 0
      %230 = vmatprep.subr.bf16.mxu0 0
      %231 = vmatpush1.bf16.msra.mxu0 0
      %232 = vmatprep.subr.bf16.mxu0 0
      %233 = vmatpush1.bf16.msra.mxu0 0
      %234 = vmatprep.subr.bf16.mxu0 0
      %235 = vmatpush1.bf16.msra.mxu0 0
      %236 = vmatprep.mubr.bf16.mxu0 0
      %237 = vmatmul.mubr.bf16.gmra.mrb[0].mxu0 %v195
      %v238 = vpop.f32.mrb[0].mxu0
      %v239 = vadd.f32 0.0, %v238
      %v240 = vpop.f32.mrb[0].mxu0
      %v241 = vpop.f32.mrb[0].mxu0
      %v242 = vpop.f32.mrb[0].mxu0
      %243 = vdwg.mxu0
      %v244 = vpack.c.bf16 %v239, %v239
      %245 = vst [vmem:[%s178] sm:$0xf] %v244
      %p246 = scmp.lt.s32.totalorder %s17, 1
      %s247 = scalar_select %p246, %s17, 1
      %p248 = scmp.lt.s32.totalorder %s18, 0
      %s249 = scalar_select %p248, %s18, 0
      %s250 = sadd.s32 %s249, %s247
      %s251 = smul.addr %s250, 4
      %s252 = scalar_lea.vmem %s2, %s251
      // Predicated region
      $region29: #{upconv_forward.3} parent=27 // pred_check
        %p253 = pneg %p97
      $region30: #{upconv_forward.3} parent=27 // pred_check_branch
        %255 = sbr.rel (%p253) target = $region32
      $region31: #{upconv_forward.3} parent=27 // pred_region
        _
      $region32: #{upconv_forward.3} parent=27 // pred_fallthru
        _
    $region28: #{upconv_forward.3} parent=5 // pred_fallthru
      _
    %p256 = scmp.le.s32.totalorder 2, %s8
    // Predicated region
    $region33: #{upconv_forward.3} parent=5 // pred_check
      %p257 = pneg %p256
    $region34: #{upconv_forward.3} parent=5 // pred_check_branch
      %259 = sbr.rel (%p257) target = $region36
    $region35: #{upconv_forward.3} parent=5 // pred_region
      %s260 = ssub.s32 %s8, 2
      // Predicated region
      $region37: #{upconv_forward.3} parent=35 // pred_check
        %p261 = pneg %p103
      $region38: #{upconv_forward.3} parent=35 // pred_check_branch
        %263 = sbr.rel (%p261) target = $region40
      $region39: #{upconv_forward.3} parent=35 // pred_region
        %p264 = scmp.lt.s32.totalorder %s19, 1
        %s265 = scalar_select %p264, %s19, 1
        %p266 = scmp.lt.s32.totalorder %s20, 0
        %s267 = scalar_select %p266, %s20, 0
        %s268 = sadd.s32 %s267, %s265
        %s269 = smul.addr %s268, 4
        %s270 = scalar_lea.vmem %s2, %s269
      $region40: #{upconv_forward.3} parent=35 // pred_fallthru
        _
    $region36: #{upconv_forward.3} parent=5 // pred_fallthru
      _
  $region6: #{upconv_forward.3} parent=0 // loop_footer
    %s12 = sadd.s32 1, %s8
  $region7: #{upconv_forward.3} parent=0 // loop_footer_branch
    %7 = sbr.rel target = $region3
  $region8: #{upconv_forward.3} parent=0 // loop_exit
    _

// kernel: upconv_forward.5
$region0: #{upconv_forward.5}
  #allocation0 [shape = 'u32[]', space=smem, size = 0x4, offset = 0x4, fixed_abs, tag = 'smem constant byte address 0x4 - core index']
  #allocation1 [shape = 'u32[144,128]{1,0:T(1,128)}', space=vmem, size = 0x12000, scoped, tag = 'internal scratch']
  %s0 = inlined_call_operand.vmem [shape: bf16[2,40,128], index: 0, kind: input, shape index: {}]
  %s1 = inlined_call_operand.vmem [shape: bf16[8,40], index: 1, kind: input, shape index: {}]
  %s2 = inlined_call_operand.vmem [shape: bf16[2,8,128], index: 2, kind: input, shape index: {}]
  %s3 = inlined_call_operand.hbm [shape: f32[2,8,128], index: 3, kind: output, shape index: {}]
  %s4 = sld [smem:[#allocation0]]
  $region45: #{upconv_forward.5} parent=0
    _
  %s6 = ssub.s32 1, %s4
  %s7 = scalar_select 0, %s6, %s4
  $region1: #{upconv_forward.5} parent=0
    #allocation2 [shape = 'u8[8192]{0}', space=vmem, size = 0x2000, scoped, tag = 'output window, operand 0']
    #allocation3 [shape = 's32[2]{0}', space=sflag, size = 0x8, scoped, tag = 'scoped memory for upconv_forward.5']
    %8 = vsyncpa [#allocation3], 0
    %s9 = scalar_lea.sflag [#allocation3], 1
    %10 = vsyncpa %s9, 0
    loop: start=0, step=1, limit=4
    $region2: #{upconv_forward.5} parent=1 // loop_pre_header
      _
    $region3: #{upconv_forward.5} parent=1 // loop_header
      %s12 = sphi 0, %s16
      %p13 = scmp.ge.s32.totalorder %s12, 4
      %s19 = sphi 0, %s31
      %s20 = sphi 0, %s27
      %s21 = sphi 0, %s19
      %s22 = sphi 0, %s20
      %s23 = sphi 0, %s21
      %s24 = sphi 0, %s22
      %s34 = sphi 0, %s36
      %s37 = sphi 0, %s34
      %s38 = sphi 0, %s37
      %s54 = sphi 0, %s38
      %s60 = sphi 0, %s62
      %s63 = sphi 0, %s60
      %s64 = sphi 0, %s63
      %s80 = sphi 0, %s64
      %s88 = sphi 0, %s90
      %s91 = sphi 0, %s88
      %s92 = sphi 0, %s91
      %s108 = sphi 0, %s92
      %s116 = sphi 0, %s118
      %s119 = sphi 0, %s116
      %s120 = sphi 0, %s119
      %s136 = sphi 0, %s120
    $region4: #{upconv_forward.5} parent=1 // loop_header_branch
      %15 = sbr.rel (%p13) target = $region8
    $region5: #{upconv_forward.5} parent=1 // loop_body
      %s17 = ssub.s32 %s12, 1
      %s18 = ssub.s32 %s12, 2
      %s25 = sadd.s32 1, %s20
      %p26 = scmp.ge.s32.totalorder %s25, 1
      %s27 = scalar_select %p26, 0, %s25
      %s28 = sadd.s32 1, %s19
      %s29 = scalar_select %p26, %s28, %s19
      %p30 = scmp.ge.s32.totalorder %s29, 2
      %s31 = scalar_select %p30, 0, %s29
      %s32 = ssub.s32 %s19, %s31
      %p33 = scmp.eq.s32.totalorder %s32, 0
      %s35 = sadd.s32 %s34, 1
      %s36 = scalar_select %p33, %s34, %s35
      %p39 = pneg %p33
      %p40 = scmp.eq.s32.totalorder %s12, 1
      %p41 = por %p39, %p40
      %p42 = scmp.ne.s32.totalorder %s34, %s37
      %p43 = scmp.eq.s32.totalorder %s12, 0
      %p44 = por %p42, %p43
      %p45 = scmp.ne.s32.totalorder %s34, %s37
      %p46 = scmp.eq.s32.totalorder %s17, 1
      %p47 = por %p45, %p46
      %p48 = scmp.ne.s32.totalorder %s37, %s38
      %p49 = scmp.eq.s32.totalorder %s17, 0
      %p50 = por %p48, %p49
      %p51 = scmp.ne.s32.totalorder %s37, %s38
      %p52 = scmp.eq.s32.totalorder %s18, 1
      %p53 = por %p51, %p52
      %p55 = scmp.ne.s32.totalorder %s38, %s54
      %p56 = scmp.eq.s32.totalorder %s18, 0
      %p57 = por %p55, %p56
      %s58 = ssub.s32 %s20, %s27
      %p59 = scmp.eq.s32.totalorder %s58, 0
      %s61 = sadd.s32 %s60, 1
      %s62 = scalar_select %p59, %s60, %s61
      %p65 = pneg %p59
      %p66 = scmp.eq.s32.totalorder %s12, 1
      %p67 = por %p65, %p66
      %p68 = scmp.ne.s32.totalorder %s60, %s63
      %p69 = scmp.eq.s32.totalorder %s12, 0
      %p70 = por %p68, %p69
      %p71 = scmp.ne.s32.totalorder %s60, %s63
      %p72 = scmp.eq.s32.totalorder %s17, 1
      %p73 = por %p71, %p72
      %p74 = scmp.ne.s32.totalorder %s63, %s64
      %p75 = scmp.eq.s32.totalorder %s17, 0
      %p76 = por %p74, %p75
      %p77 = scmp.ne.s32.totalorder %s63, %s64
      %p78 = scmp.eq.s32.totalorder %s18, 1
      %p79 = por %p77, %p78
      %p81 = scmp.ne.s32.totalorder %s64, %s80
      %p82 = scmp.eq.s32.totalorder %s18, 0
      %p83 = por %p81, %p82
      %s84 = ssub.s32 %s19, %s31
      %s85 = ssub.s32 %s20, %s27
      %s86 = sor.u32 %s84, %s85
      %p87 = scmp.eq.s32.totalorder %s86, 0
      %s89 = sadd.s32 %s88, 1
      %s90 = scalar_select %p87, %s88, %s89
      %p93 = pneg %p87
      %p94 = scmp.eq.s32.totalorder %s12, 1
      %p95 = por %p93, %p94
      %p96 = scmp.ne.s32.totalorder %s88, %s91
      %p97 = scmp.eq.s32.totalorder %s12, 0
      %p98 = por %p96, %p97
      %p99 = scmp.ne.s32.totalorder %s88, %s91
      %p100 = scmp.eq.s32.totalorder %s17, 1
      %p101 = por %p99, %p100
      %p102 = scmp.ne.s32.totalorder %s91, %s92
      %p103 = scmp.eq.s32.totalorder %s17, 0
      %p104 = por %p102, %p103
      %p105 = scmp.ne.s32.totalorder %s91, %s92
      %p106 = scmp.eq.s32.totalorder %s18, 1
      %p107 = por %p105, %p106
      %p109 = scmp.ne.s32.totalorder %s92, %s108
      %p110 = scmp.eq.s32.totalorder %s18, 0
      %p111 = por %p109, %p110
      %s112 = ssub.s32 %s19, %s31
      %s113 = ssub.s32 %s20, %s27
      %s114 = sor.u32 %s112, %s113
      %p115 = scmp.eq.s32.totalorder %s114, 0
      %s117 = sadd.s32 %s116, 1
      %s118 = scalar_select %p115, %s116, %s117
      %p121 = pneg %p115
      %p122 = scmp.eq.s32.totalorder %s12, 1
      %p123 = por %p121, %p122
      %p124 = scmp.ne.s32.totalorder %s116, %s119
      %p125 = scmp.eq.s32.totalorder %s12, 0
      %p126 = por %p124, %p125
      %p127 = scmp.ne.s32.totalorder %s116, %s119
      %p128 = scmp.eq.s32.totalorder %s17, 1
      %p129 = por %p127, %p128
      %p130 = scmp.ne.s32.totalorder %s119, %s120
      %p131 = scmp.eq.s32.totalorder %s17, 0
      %p132 = por %p130, %p131
      %p133 = scmp.ne.s32.totalorder %s119, %s120
      %p134 = scmp.eq.s32.totalorder %s18, 1
      %p135 = por %p133, %p134
      %p137 = scmp.ne.s32.totalorder %s120, %s136
      %p138 = scmp.eq.s32.totalorder %s18, 0
      %p139 = por %p137, %p138
      %p140 = scmp.le.s32.totalorder 1, %s12
      %p141 = scmp.lt.s32.totalorder %s12, 3
      %p142 = pnand %p140, %p141
      %p143 = pneg %p142
      // Predicated region
      $region9: #{upconv_forward.5} parent=5 // pred_check
        _
      $region10: #{upconv_forward.5} parent=5 // pred_check_branch
        %145 = sbr.rel (%p142) target = $region12
      $region11: #{upconv_forward.5} parent=5 // pred_region
        %s146 = ssub.s32 %s12, 1
        // Predicated region
        $region13: #{upconv_forward.5} parent=11 // pred_check
          %p147 = pneg %p76
        $region14: #{upconv_forward.5} parent=11 // pred_check_branch
          %149 = sbr.rel (%p147) target = $region16
        $region15: #{upconv_forward.5} parent=11 // pred_region
          %p150 = scmp.lt.s32.totalorder %s22, 0
          %s151 = scalar_select %p150, %s22, 0
          %s152 = smul.addr %s151, 4
          %s153 = scalar_lea.vmem %s1, %s152
        $region16: #{upconv_forward.5} parent=11 // pred_fallthru
          _
      $region12: #{upconv_forward.5} parent=5 // pred_fallthru
        _
      %p154 = scmp.lt.s32.totalorder %s12, 2
      // Predicated region
      $region17: #{upconv_forward.5} parent=5 // pred_check
        %p155 = pneg %p154
      $region18: #{upconv_forward.5} parent=5 // pred_check_branch
        %157 = sbr.rel (%p155) target = $region20
      $region19: #{upconv_forward.5} parent=5 // pred_region
        // Predicated region
        $region21: #{upconv_forward.5} parent=19 // pred_check
          %p158 = pneg %p44
        $region22: #{upconv_forward.5} parent=19 // pred_check_branch
          %160 = sbr.rel (%p158) target = $region24
        $region23: #{upconv_forward.5} parent=19 // pred_region
          %p161 = scmp.lt.s32.totalorder %s19, 1
          %s162 = scalar_select %p161, %s19, 1
          %s163 = smul.addr %s162, 5
          %s164 = smul.addr %s163, 4
          %s165 = scalar_lea.vmem %s0, %s164
        $region24: #{upconv_forward.5} parent=19 // pred_fallthru
          _
        // Predicated region
        $region25: #{upconv_forward.5} parent=19 // pred_check
          %p166 = pneg %p98
        $region26: #{upconv_forward.5} parent=19 // pred_check_branch
          %168 = sbr.rel (%p166) target = $region28
        $region27: #{upconv_forward.5} parent=19 // pred_region
          %p169 = scmp.lt.s32.totalorder %s19, 1
          %s170 = scalar_select %p169, %s19, 1
          %p171 = scmp.lt.s32.totalorder %s20, 0
          %s172 = scalar_select %p171, %s20, 0
          %s173 = sadd.s32 %s172, %s170
          %s174 = smul.addr %s173, 4
          %s175 = scalar_lea.vmem %s2, %s174
        $region28: #{upconv_forward.5} parent=19 // pred_fallthru
          _
      $region20: #{upconv_forward.5} parent=5 // pred_fallthru
        _
      %p176 = scmp.le.s32.totalorder 1, %s12
      %p177 = scmp.lt.s32.totalorder %s12, 3
      %p178 = pnand %p176, %p177
      %p179 = pneg %p178
      // Predicated region
      $region29: #{upconv_forward.5} parent=5 // pred_check
        _
      $region30: #{upconv_forward.5} parent=5 // pred_check_branch
        %181 = sbr.rel (%p178) target = $region32
      $region31: #{upconv_forward.5} parent=5 // pred_region
        %s182 = ssub.s32 %s12, 1
        %p183 = scmp.lt.s32.totalorder %s21, 1
        %s184 = scalar_select %p183, %s21, 1
        %s185 = smul.addr %s184, 5
        %s186 = smul.addr %s185, 4
        %s187 = scalar_lea.vmem %s0, %s186
        %p188 = pneg %p50
        %p189 = pneg %p47
        %p190 = scmp.lt.s32.totalorder %s22, 0
        %s191 = scalar_select %p190, %s22, 0
        %s192 = smul.addr %s191, 4
        %s193 = scalar_lea.vmem %s1, %s192
        %p194 = pneg %p76
        %p195 = pneg %p73
        %p196 = scmp.lt.s32.totalorder %s21, 1
        %s197 = scalar_select %p196, %s21, 1
        %p198 = scmp.lt.s32.totalorder %s22, 0
        %s199 = scalar_select %p198, %s22, 0
        %s200 = sadd.s32 %s199, %s197
        %s201 = smul.addr %s200, 4
        %s202 = scalar_lea.vmem %s2, %s201
        %p203 = pneg %p104
        %p204 = pneg %p101
        %p205 = pneg %p132
        %p206 = pneg %p129
        %s207 = sand.u32 %s119, 1
        %s208 = scalar_lea.sflag [#allocation3], %s207
        %s209 = sand.u32 %s119, 1
        %s210 = smul.addr %s209, 8
        %s211 = scalar_lea.vmem [#allocation2], %s210
        %p212 = scmp.lt.s32.totalorder %s21, 1
        %s213 = scalar_select %p212, %s21, 1
        %s214 = smul.addr %s213, 5
        %s215 = smul.addr %s214, 4
        %s216 = scalar_lea.vmem %s0, %s215
        %p217 = scmp.lt.s32.totalorder %s22, 0
        %s218 = scalar_select %p217, %s22, 0
        %s219 = smul.addr %s218, 4
        %s220 = scalar_lea.vmem %s1, %s219
        %p221 = scmp.lt.s32.totalorder %s21, 1
        %s222 = scalar_select %p221, %s21, 1
        %p223 = scmp.lt.s32.totalorder %s22, 0
        %s224 = scalar_select %p223, %s22, 0
        %s225 = sadd.s32 %s224, %s222
        %s226 = smul.addr %s225, 4
        %s227 = scalar_lea.vmem %s2, %s226
        %v229 = vld [vmem:[%s220] sm:$0xf]
        %v230 = vld [vmem:[%s216] sm:$0xf]
        %v231 = vld [vmem:[%s216 + $0x4] sm:$0xf]
        %v232 = vld [vmem:[%s216 + $0x8] sm:$0xf]
        %v233 = vld [vmem:[%s216 + $0xc] sm:$0xf]
        %v234 = vld [vmem:[%s216 + $0x10] sm:$0xf]
        %v240 = vunpack.c.l.b16 %v230
        %v241 = vunpack.c.l.b16 %v231
        %v242 = vunpack.c.l.b16 %v232
        %v243 = vunpack.c.l.b16 %v233
        %v244 = vunpack.c.l.b16 %v234
        %v245 = vpack.c.b16 %v241, %v240
        %v246 = vpack.c.b16 %v243, %v242
        %v247 = vpack.c.b16 %v244, %v244
        %vm250 = vcmask 326656
        %v252 = vsel %vm250, %v229, 0
        %vm254 = vcmask 1043456
        %v256 = vsel %vm254, %v247, 0
        %258 = vmatprep.subr.bf16.mxu0 0
        %259 = vmatpush1.bf16.msra.mxu0 %v245
        %260 = vmatprep.subr.bf16.mxu0 0
        %261 = vmatpush1.bf16.msra.mxu0 %v246
        %262 = vmatprep.subr.bf16.mxu0 0
        %263 = vmatpush1.bf16.msra.mxu0 %v256
        %264 = vmatprep.subr.bf16.mxu0 0
        %265 = vmatpush1.bf16.msra.mxu0 0
        %266 = vmatprep.subr.bf16.mxu0 0
        %267 = vmatpush1.bf16.msra.mxu0 0
        %268 = vmatprep.subr.bf16.mxu0 0
        %269 = vmatpush1.bf16.msra.mxu0 0
        %270 = vmatprep.subr.bf16.mxu0 0
        %271 = vmatpush1.bf16.msra.mxu0 0
        %272 = vmatprep.subr.bf16.mxu0 0
        %273 = vmatpush1.bf16.msra.mxu0 0
        %274 = vmatprep.subr.bf16.mxu0 0
        %275 = vmatpush1.bf16.msra.mxu0 0
        %276 = vmatprep.subr.bf16.mxu0 0
        %277 = vmatpush1.bf16.msra.mxu0 0
        %278 = vmatprep.subr.bf16.mxu0 0
        %279 = vmatpush1.bf16.msra.mxu0 0
        %280 = vmatprep.subr.bf16.mxu0 0
        %281 = vmatpush1.bf16.msra.mxu0 0
        %282 = vmatprep.subr.bf16.mxu0 0
        %283 = vmatpush1.bf16.msra.mxu0 0
        %284 = vmatprep.subr.bf16.mxu0 0
        %285 = vmatpush1.bf16.msra.mxu0 0
        %286 = vmatprep.subr.bf16.mxu0 0
        %287 = vmatpush1.bf16.msra.mxu0 0
        %288 = vmatprep.subr.bf16.mxu0 0
        %289 = vmatpush1.bf16.msra.mxu0 0
        %290 = vmatprep.mubr.bf16.mxu0 0
        %291 = vmatmul.mubr.bf16.gmra.mrb[0].mxu0 %v252
        %v292 = vpop.f32.mrb[0].mxu0
        %v293 = vadd.f32 0.0, %v292
        %v294 = vpop.f32.mrb[0].mxu0
        %v295 = vpop.f32.mrb[0].mxu0
        %v296 = vpop.f32.mrb[0].mxu0
        %297 = vdwg.mxu0
        %298 = vadd.xlane.f32.xlu0 %v293
        %v299 = vpop.xlane.xlu0 %298
        %v300 = vmul.f32 %v299, 0.0078125
        %v301 = vsub.f32 %v293, %v300
        %v302 = vmul.f32 %v301, %v301
        %303 = vadd.xlane.f32.xlu0 %v302
        %v304 = vpop.xlane.xlu0 %303
        %v305 = vmul.f32 %v304, 0.0078125
        %v306 = vadd.f32 %v305, 1e-05
        %v307 = vrsqrt.pop %v306
        %v308 = vmul.f32 %v301, %v307
        %v309 = vld [vmem:[%s227] sm:$0xf]
        %v310 = vunpack.c.l.bf16 %v309
        %v311 = vadd.f32 %v308, %v310
        %v312 = vmax.f32 %v311, 0.0
        %313 = vst [vmem:[%s211] sm:$0xff] %v312
        %s314 = sand.u32 %s119, 1
        %s315 = scalar_lea.sflag [#allocation3], %s314
        %s316 = sand.u32 %s119, 1
        %s317 = smul.addr %s316, 8
        %s318 = scalar_lea.vmem [#allocation2], %s317
        // Predicated region
        $region33: #{upconv_forward.5} parent=31 // pred_check
          %p319 = pneg %p129
        $region34: #{upconv_forward.5} parent=31 // pred_check_branch
          %321 = sbr.rel (%p319) target = $region36
        $region35: #{upconv_forward.5} parent=31 // pred_region
          %s323 = ssub.s32 128, 128
          %324 = vsyncadd %s315, %s323
          %s325 = sadd.s32 %s22, %s21
          %s326 = smul.addr %s325, 128
          %s327 = scalar_lea.hbm %s3, %s326
          %s329 = sshll.u32 %s318, 4
          %s330 = int_to_ptr.vmem [resolvable:$true] %s329
          %332 = dma.vmem_to_hbm [thread:$0]  %s330, 128, %s327, %s315
        $region36: #{upconv_forward.5} parent=31 // pred_fallthru
          _
      $region32: #{upconv_forward.5} parent=5 // pred_fallthru
        _
      %p333 = scmp.le.s32.totalorder 2, %s12
      // Predicated region
      $region37: #{upconv_forward.5} parent=5 // pred_check
        %p334 = pneg %p333
      $region38: #{upconv_forward.5} parent=5 // pred_check_branch
        %336 = sbr.rel (%p334) target = $region40
      $region39: #{upconv_forward.5} parent=5 // pred_region
        %s337 = ssub.s32 %s12, 2
        // Predicated region
        $region41: #{upconv_forward.5} parent=39 // pred_check
          %p338 = pneg %p135
        $region42: #{upconv_forward.5} parent=39 // pred_check_branch
          %340 = sbr.rel (%p338) target = $region44
        $region43: #{upconv_forward.5} parent=39 // pred_region
          %s341 = sand.u32 %s120, 1
          %s342 = scalar_lea.sflag [#allocation3], %s341
          %s343 = sand.u32 %s120, 1
          %s344 = smul.addr %s343, 8
          %s345 = scalar_lea.vmem [#allocation2], %s344
          %346 = dma.done %s342, 128
        $region44: #{upconv_forward.5} parent=39 // pred_fallthru
          _
      $region40: #{upconv_forward.5} parent=5 // pred_fallthru
        _
    $region6: #{upconv_forward.5} parent=1 // loop_footer
      %s16 = sadd.s32 1, %s12
    $region7: #{upconv_forward.5} parent=1 // loop_footer_branch
      %11 = sbr.rel target = $region3
    $region8: #{upconv_forward.5} parent=1 // loop_exit
      _
    %347 = vsyncpa [#allocation3], 1
    %s348 = scalar_lea.sflag [#allocation3], 1
    %349 = vsyncpa %s348, 1

</llo_original>
